<compile_context>
chip_gen: v7x
topology: tpu7x:2x2x1
jax: 0.10.0
libtpu: 0.0.40
codegen_flags: <defaults>
</compile_context>

<pallas_src>
import functools

import jax
import jax.numpy as jnp
from jax.experimental import pallas as pl
from jax.experimental.pallas import tpu as pltpu


def _round_up(a: int, m: int) -> int:
    return ((a + m - 1) // m) * m


def _cdiv(a: int, b: int) -> int:
    return (a + b - 1) // b


def _vmem_capacity_bytes() -> int:
    try:
        cap = int(pltpu.get_tpu_info().vmem_capacity_bytes)
        if cap > 0:
            return cap
    except Exception:
        pass
    return 64 << 20  # conservative fallback = v7x per-TensorCore VMEM


def _device_kind() -> str:
    try:
        return jax.devices()[0].device_kind.lower()
    except Exception:
        return ""


def _default_tiles(vmem_cap: int, kind: str) -> tuple[int, int, int]:
    if vmem_cap <= (80 << 20):   # v7x-class: 64 MiB per TensorCore
        return 1024, 1024, 1024
    if "v5" in kind:             # v5e/v5p: ~240 FLOP/byte ridge, spend VMEM on tk
        return 512, 1024, 2048
    return 1024, 2048, 1024      # v6e and other 128 MiB-VMEM parts


def _linear_matmul_kernel(x_ref, wt_ref, o_ref, acc_ref):
    # grid = (cdiv(M, tm), cdiv(N, tn), Kp // tk); K innermost ("arbitrary").
    @pl.when(pl.program_id(2) == 0)
    def _():
        acc_ref[...] = jnp.zeros_like(acc_ref)

    # x_ref: (tm, tk), wt_ref: (tk, tn) -> canonical MXU matmul; weight was
    # pre-transposed in the wrapper so no in-kernel transpose is needed.
    acc_ref[...] += jnp.dot(
        x_ref[...], wt_ref[...], preferred_element_type=jnp.float32
    )

    @pl.when(pl.program_id(2) == pl.num_programs(2) - 1)
    def _():
        o_ref[...] = acc_ref[...].astype(o_ref.dtype)


@functools.partial(jax.jit, static_argnames=("tm", "tn", "tk"))
def linear_forward(
    x: jax.Array,
    w: jax.Array,
    *,
    tm: int | None = None,
    tn: int | None = None,
    tk: int | None = None,
) -> jax.Array:
    """y = x @ w.T, with w of shape (out_features, in_features)."""
    *lead, K = x.shape
    N, Kw = w.shape
    assert K == Kw, "in_features mismatch"

    x2d = x.reshape(-1, K)
    M = x2d.shape[0]

    out_dtype = jnp.result_type(x.dtype, w.dtype)
    x_item = jnp.dtype(x.dtype).itemsize
    w_item = jnp.dtype(w.dtype).itemsize
    o_item = jnp.dtype(out_dtype).itemsize

    vmem_cap = _vmem_capacity_bytes()
    d_tm, d_tn, d_tk = _default_tiles(vmem_cap, _device_kind())
    tm = d_tm if tm is None else tm
    tn = d_tn if tn is None else tn
    tk = d_tk if tk is None else tk

    # Clamp tiles to the problem: a block equal to the full dim is always
    # layout-legal; otherwise tiles stay (8, 128)-aligned and ragged M/N edge
    # blocks are handled by Pallas (OOB reads only feed OOB output positions,
    # whose writes are dropped) — no wrapper-side padding or output slicing.
    tm = M if M <= tm else tm
    tn = N if N <= tn else tn
    tk = K if K <= tk else tk

    # v7x megacore: ensure >= 2 parallel (i, j) blocks on small-M shapes so
    # both TensorCores get work.
    if vmem_cap <= (80 << 20) and _cdiv(M, tm) * _cdiv(N, tn) < 2 and N >= 256:
        tn = max(128, _round_up(_cdiv(N, 2), 128))

    # Only the K (reduction) edge needs real zeros; pad it iff K % tk != 0.
    Kp = K if K % tk == 0 else _round_up(K, tk)
    w_t = w.T  # (K, N); a stored parameter — callers can keep it pre-transposed.
    if Kp != K:
        x2d = jnp.pad(x2d, ((0, 0), (0, Kp - K)))
        w_t = jnp.pad(w_t, ((0, Kp - K), (0, 0)))

    grid = (_cdiv(M, tm), _cdiv(N, tn), Kp // tk)

    # VMEM budget: double-buffered x / w / out tiles + f32 accumulator scratch.
    need = (
        2 * (tm * tk * x_item + tk * tn * w_item + tm * tn * o_item)
        + tm * tn * 4
    )
    vmem_limit = min(max(need + (2 << 20), 16 << 20), int(vmem_cap * 0.85))
    vmem_limit = max(vmem_limit, need)

    cost = pl.CostEstimate(
        flops=2 * M * N * K,
        transcendentals=0,
        bytes_accessed=(
            M * K * x_item * grid[1]      # x streamed once per N-tile
            + K * N * w_item * grid[0]    # w streamed once per M-tile
            + M * N * o_item
        ),
    )

    out2d = pl.pallas_call(
        _linear_matmul_kernel,
        out_shape=jax.ShapeDtypeStruct((M, N), out_dtype),
        grid_spec=pltpu.PrefetchScalarGridSpec(
            num_scalar_prefetch=0,
            grid=grid,
            in_specs=[
                pl.BlockSpec((tm, tk), lambda i, j, k: (i, k)),
                pl.BlockSpec((tk, tn), lambda i, j, k: (k, j)),
            ],
            out_specs=pl.BlockSpec((tm, tn), lambda i, j, k: (i, j)),
            scratch_shapes=[pltpu.VMEM((tm, tn), jnp.float32)],
        ),
        compiler_params=pltpu.CompilerParams(
            dimension_semantics=("parallel", "parallel", "arbitrary"),
            vmem_limit_bytes=vmem_limit,
        ),
        cost_estimate=cost,
    )(x2d, w_t)

    return out2d.reshape(*lead, N)


def init_linear_weight(key, out_features: int, in_features: int, dtype=jnp.float32):
    # Matches torch.nn.init.trunc_normal_(w, std=1, a=-3, b=3):
    # standard normal truncated to [-3, 3].
    return jax.random.truncated_normal(
        key, lower=-3.0, upper=3.0, shape=(out_features, in_features)
    ).astype(dtype)


if __name__ == "__main__":
    key = jax.random.PRNGKey(0)
    k_x, k_w = jax.random.split(key)

    batch, seq = 2, 8
    in_features, out_features = 32, 64

    x = jax.random.normal(k_x, (batch, seq, in_features), dtype=jnp.float32)
    w = init_linear_weight(k_w, out_features, in_features, dtype=jnp.float32)

    y = linear_forward(x, w)
    jax.block_until_ready(y)

    # Sanity check against plain-JAX reference.
    y_ref = jnp.einsum("oi,...i->...o", w, x)
    assert y.shape == (batch, seq, out_features)
    assert jnp.allclose(y, y_ref, atol=1e-4, rtol=1e-4)

    print("KERNEL_OK")
</pallas_src>

<mosaic_0001>
module attributes {stable_mosaic.version = 11 : i64} {
  func.func @_linear_matmul_kernel(%arg0: i32, %arg1: i32, %arg2: i32, %arg3: memref<16x32xf32, #tpu.memory_space<vmem>>, %arg4: memref<32x64xf32, #tpu.memory_space<vmem>>, %arg5: memref<16x64xf32, #tpu.memory_space<vmem>>, %arg6: memref<16x64xf32, #tpu.memory_space<vmem>>) attributes {dimension_semantics = [#tpu.dimension_semantics<parallel>, #tpu.dimension_semantics<parallel>, #tpu.dimension_semantics<arbitrary>], iteration_bounds = array<i64: 1, 1, 1>, scalar_prefetch = 0 : i64, scratch_operands = 1 : i64, tpu.core_type = #tpu.core_type<tc>, window_params = [{transform_indices = @transform_0, window_bounds = array<i64: 16, 32>}, {transform_indices = @transform_1, window_bounds = array<i64: 32, 64>}, {transform_indices = @transform_2, window_bounds = array<i64: 16, 64>}]} {
    %c0_i32 = arith.constant 0 : i32
    %0 = arith.cmpi eq, %arg2, %c0_i32 : i32
    %1 = arith.extui %0 : i1 to i32
    %c0_i32_0 = arith.constant 0 : i32
    %2 = arith.cmpi ne, %1, %c0_i32_0 : i32
    scf.if %2 {
      %cst_10 = arith.constant 0.000000e+00 : f32
      %12 = vector.broadcast %cst_10 : f32 to vector<16x64xf32>
      %c0_11 = arith.constant 0 : index
      %c0_12 = arith.constant 0 : index
      %13 = vector.load %arg6[%c0_11, %c0_12] : memref<16x64xf32, #tpu.memory_space<vmem>>, vector<16x64xf32>
      tpu.vector_store %arg6[%c0_11, %c0_12], %12 {strides = array<i32>} : memref<16x64xf32, #tpu.memory_space<vmem>>, vector<16x64xf32>,
    } else {
    }
    %c0 = arith.constant 0 : index
    %c0_1 = arith.constant 0 : index
    %3 = vector.load %arg6[%c0, %c0_1] : memref<16x64xf32, #tpu.memory_space<vmem>>, vector<16x64xf32>
    %c0_2 = arith.constant 0 : index
    %c0_3 = arith.constant 0 : index
    %4 = vector.load %arg3[%c0_2, %c0_3] : memref<16x32xf32, #tpu.memory_space<vmem>>, vector<16x32xf32>
    %c0_4 = arith.constant 0 : index
    %c0_5 = arith.constant 0 : index
    %5 = vector.load %arg4[%c0_4, %c0_5] : memref<32x64xf32, #tpu.memory_space<vmem>>, vector<32x64xf32>
    %cst = arith.constant dense<0.000000e+00> : vector<16x64xf32>
    %6 = tpu.matmul %4, %5, %cst {dimension_numbers = #tpu.dot_dimension_numbers<[1], [0], [0], [1], [0, 0, 1, 1], [], []>} : vector<16x32xf32>, vector<32x64xf32>, vector<16x64xf32> -> vector<16x64xf32>
    %7 = arith.addf %3, %6 : vector<16x64xf32>
    %c0_6 = arith.constant 0 : index
    %c0_7 = arith.constant 0 : index
    %8 = vector.load %arg6[%c0_6, %c0_7] : memref<16x64xf32, #tpu.memory_space<vmem>>, vector<16x64xf32>
    tpu.vector_store %arg6[%c0_6, %c0_7], %7 {strides = array<i32>} : memref<16x64xf32, #tpu.memory_space<vmem>>, vector<16x64xf32>,
    %c0_i32_8 = arith.constant 0 : i32
    %9 = arith.cmpi eq, %arg2, %c0_i32_8 : i32
    %10 = arith.extui %9 : i1 to i32
    %c0_i32_9 = arith.constant 0 : i32
    %11 = arith.cmpi ne, %10, %c0_i32_9 : i32
    scf.if %11 {
      %c0_10 = arith.constant 0 : index
      %c0_11 = arith.constant 0 : index
      %12 = vector.load %arg6[%c0_10, %c0_11] : memref<16x64xf32, #tpu.memory_space<vmem>>, vector<16x64xf32>
      %c0_12 = arith.constant 0 : index
      %c0_13 = arith.constant 0 : index
      %13 = vector.load %arg5[%c0_12, %c0_13] : memref<16x64xf32, #tpu.memory_space<vmem>>, vector<16x64xf32>
      tpu.vector_store %arg5[%c0_12, %c0_13], %12 {strides = array<i32>} : memref<16x64xf32, #tpu.memory_space<vmem>>, vector<16x64xf32>,
    } else {
    }
    return
  }
  func.func @transform_0(%arg0: i32, %arg1: i32, %arg2: i32) -> (i32, i32) {
    %c0_i32 = arith.constant 0 : i32
    return %arg0, %arg2 : i32, i32
  }
  func.func @transform_1(%arg0: i32, %arg1: i32, %arg2: i32) -> (i32, i32) {
    %c0_i32 = arith.constant 0 : i32
    return %arg2, %arg1 : i32, i32
  }
  func.func @transform_2(%arg0: i32, %arg1: i32, %arg2: i32) -> (i32, i32) {
    %c0_i32 = arith.constant 0 : i32
    return %arg0, %arg1 : i32, i32
  }
}

</mosaic_0001>

<llo_original>
// kernel: linear_forward.1
$region0: #{linear_forward.1}
  #allocation0 [shape = 'u32[]', space=smem, size = 0x4, offset = 0x4, fixed_abs, tag = 'smem constant byte address 0x4 - core index']
  #allocation1 [shape = 'u32[144,128]{1,0:T(1,128)}', space=vmem, size = 0x12000, scoped, tag = 'internal scratch']
  #allocation2 [shape = 'f32[16,64]{1,0:T(8,128)}', space=vmem, size = 0x2000, scoped, tag = 'scratch operand']
  %s0 = inlined_call_operand.hbm [shape: f32[16,32], index: 0, kind: input, shape index: {}]
  %s1 = inlined_call_operand.hbm [shape: f32[32,64], index: 1, kind: input, shape index: {}]
  %s2 = inlined_call_operand.hbm [shape: f32[16,64], index: 2, kind: output, shape index: {}]
  %s3 = sld [smem:[#allocation0]]
  $region34: #{linear_forward.1} parent=0
    _
  %s5 = ssub.s32 1, %s3
  %s6 = scalar_select 0, %s5, %s3
  $region1: #{linear_forward.1} parent=0
    #allocation3 [shape = 'u8[8192]{0}', space=vmem, size = 0x2000, scoped, tag = 'input window, operand 0, single buffered']
    #allocation4 [shape = 's32[1]{0}', space=sflag, size = 0x4, scoped, tag = 'scoped memory for linear_forward.1']
    #allocation5 [shape = 's32[1]{0}', space=sflag, size = 0x4, scoped, tag = 'scoped memory for linear_forward.1']
    #allocation6 [shape = 'u8[16384]{0}', space=vmem, size = 0x4000, scoped, tag = 'input window, operand 1, single buffered']
    #allocation7 [shape = 's32[1]{0}', space=sflag, size = 0x4, scoped, tag = 'scoped memory for linear_forward.1']
    #allocation8 [shape = 'u8[8192]{0}', space=vmem, size = 0x2000, scoped, tag = 'output window, operand 0, single buffered']
    %7 = vsyncpa [#allocation4], 0
    %8 = vsyncpa [#allocation7], 0
    %9 = vsyncpa [#allocation5], 0
    // Predicated region
    $region2: #{linear_forward.1} parent=1 // pred_check
      _
    $region3: #{linear_forward.1} parent=1 // pred_check_branch
      %11 = sbr.rel (0) target = $region5
    $region4: #{linear_forward.1} parent=1 // pred_region
      %s13 = ssub.s32 256, 256
      %14 = vsyncadd [#allocation4], %s13
      %s15 = sshll.u32 [#allocation3], 4
      %s16 = int_to_ptr.vmem [resolvable:$true] %s15
      %21 = dma.hbm_to_vmem [thread:$0]  %s0, 256, %s16, [#allocation4], 128, 128, 8
    $region5: #{linear_forward.1} parent=1 // pred_fallthru
      _
    // Predicated region
    $region6: #{linear_forward.1} parent=1 // pred_check
      _
    $region7: #{linear_forward.1} parent=1 // pred_check_branch
      %23 = sbr.rel (0) target = $region9
    $region8: #{linear_forward.1} parent=1 // pred_region
      %s25 = ssub.s32 512, 512
      %26 = vsyncadd [#allocation7], %s25
      %s27 = sshll.u32 [#allocation6], 4
      %s28 = int_to_ptr.vmem [resolvable:$true] %s27
      %33 = dma.hbm_to_vmem [thread:$0]  %s1, 512, %s28, [#allocation7], 128, 128, 8
    $region9: #{linear_forward.1} parent=1 // pred_fallthru
      _
    // Predicated region
    $region10: #{linear_forward.1} parent=1 // pred_check
      _
    $region11: #{linear_forward.1} parent=1 // pred_check_branch
      %35 = sbr.rel (0) target = $region13
    $region12: #{linear_forward.1} parent=1 // pred_region
      %36 = dma.done [#allocation4], 256
    $region13: #{linear_forward.1} parent=1 // pred_fallthru
      _
    // Predicated region
    $region14: #{linear_forward.1} parent=1 // pred_check
      _
    $region15: #{linear_forward.1} parent=1 // pred_check_branch
      %38 = sbr.rel (0) target = $region17
    $region16: #{linear_forward.1} parent=1 // pred_region
      %39 = dma.done [#allocation7], 512
    $region17: #{linear_forward.1} parent=1 // pred_fallthru
      _
    %p40 = scmp.eq.s32.totalorder 0, 0
    // Predicated region
    $region18: #{linear_forward.1} parent=1 // pred_check
      %p41 = pneg %p40
    $region19: #{linear_forward.1} parent=1 // pred_check_branch
      %43 = sbr.rel (%p41) target = $region21
    $region20: #{linear_forward.1} parent=1 // pred_region
      %vm44 = vcmask 523264
      %45 = vst.msk [vmem:[#allocation2] sm:$0xff] %vm44, 0.0
      %46 = vst.msk [vmem:[#allocation2 + $0x8] sm:$0xff] %vm44, 0.0
    $region21: #{linear_forward.1} parent=1 // pred_fallthru
      _
    %v47 = vld [vmem:[#allocation2] sm:$0xff]
    %v48 = vld [vmem:[#allocation2 + $0x8] sm:$0xff]
    %v49 = vld [vmem:[#allocation3] sm:$0xff]
    %v50 = vld [vmem:[#allocation3 + $0x8] sm:$0xff]
    %v51 = vld [vmem:[#allocation6] sm:$0xff]
    %v52 = vld [vmem:[#allocation6 + $0x8] sm:$0xff]
    %v53 = vld [vmem:[#allocation6 + $0x10] sm:$0xff]
    %v54 = vld [vmem:[#allocation6 + $0x18] sm:$0xff]
    %vm55 = vcmask 261120
    %v57 = vsel %vm55, %v49, 0
    %v60 = vsel %vm55, %v50, 0
    %62 = vmatprep.subr.mxu0 0.0
    %63 = vmatpush1.msra.mxu0 %v51
    %64 = vmatprep.subr.mxu0 0.0
    %65 = vmatpush1.msra.mxu0 %v52
    %66 = vmatprep.subr.mxu0 0.0
    %67 = vmatpush1.msra.mxu0 %v53
    %68 = vmatprep.subr.mxu0 0.0
    %69 = vmatpush1.msra.mxu0 %v54
    %70 = vmatprep.subr.mxu0 0.0
    %71 = vmatpush1.msra.mxu0 0.0
    %72 = vmatprep.subr.mxu0 0.0
    %73 = vmatpush1.msra.mxu0 0.0
    %74 = vmatprep.subr.mxu0 0.0
    %75 = vmatpush1.msra.mxu0 0.0
    %76 = vmatprep.subr.mxu0 0.0
    %77 = vmatpush1.msra.mxu0 0.0
    %78 = vmatprep.subr.mxu0 0.0
    %79 = vmatpush1.msra.mxu0 0.0
    %80 = vmatprep.subr.mxu0 0.0
    %81 = vmatpush1.msra.mxu0 0.0
    %82 = vmatprep.subr.mxu0 0.0
    %83 = vmatpush1.msra.mxu0 0.0
    %84 = vmatprep.subr.mxu0 0.0
    %85 = vmatpush1.msra.mxu0 0.0
    %86 = vmatprep.subr.mxu0 0.0
    %87 = vmatpush1.msra.mxu0 0.0
    %88 = vmatprep.subr.mxu0 0.0
    %89 = vmatpush1.msra.mxu0 0.0
    %90 = vmatprep.subr.mxu0 0.0
    %91 = vmatpush1.msra.mxu0 0.0
    %92 = vmatprep.subr.mxu0 0.0
    %93 = vmatpush1.msra.mxu0 0.0
    %94 = vmatprep.subr.mxu0 0.0
    %95 = vmatpush1.msra.mxu0 0.0
    %96 = vmatprep.subr.mxu0 0.0
    %97 = vmatpush1.msra.mxu0 0.0
    %98 = vmatprep.subr.mxu0 0.0
    %99 = vmatpush1.msra.mxu0 0.0
    %100 = vmatprep.subr.mxu0 0.0
    %101 = vmatpush1.msra.mxu0 0.0
    %102 = vmatprep.subr.mxu0 0.0
    %103 = vmatpush1.msra.mxu0 0.0
    %104 = vmatprep.subr.mxu0 0.0
    %105 = vmatpush1.msra.mxu0 0.0
    %106 = vmatprep.subr.mxu0 0.0
    %107 = vmatpush1.msra.mxu0 0.0
    %108 = vmatprep.subr.mxu0 0.0
    %109 = vmatpush1.msra.mxu0 0.0
    %110 = vmatprep.subr.mxu0 0.0
    %111 = vmatpush1.msra.mxu0 0.0
    %112 = vmatprep.subr.mxu0 0.0
    %113 = vmatpush1.msra.mxu0 0.0
    %114 = vmatprep.subr.mxu0 0.0
    %115 = vmatpush1.msra.mxu0 0.0
    %116 = vmatprep.subr.mxu0 0.0
    %117 = vmatpush1.msra.mxu0 0.0
    %118 = vmatprep.subr.mxu0 0.0
    %119 = vmatpush1.msra.mxu0 0.0
    %120 = vmatprep.subr.mxu0 0.0
    %121 = vmatpush1.msra.mxu0 0.0
    %122 = vmatprep.subr.mxu0 0.0
    %123 = vmatpush1.msra.mxu0 0.0
    %124 = vmatprep.subr.mxu0 0.0
    %125 = vmatpush1.msra.mxu0 0.0
    %126 = vmatprep.mubr.f32.mxu0 0.0
    %127 = vmatmul.mubr.f32.gmra.mrb[0].mxu0 %v57
    %v128 = vpop.f32.mrb[0].mxu0
    %v129 = vadd.f32 0.0, %v128
    %v130 = vpop.f32.mrb[0].mxu0
    %131 = vmatprep.mubr.f32.mxu0 0.0
    %132 = vmatmul.mubr.f32.gmra.mrb[0].mxu0 %v60
    %v133 = vpop.f32.mrb[0].mxu0
    %v134 = vadd.f32 0.0, %v133
    %v135 = vpop.f32.mrb[0].mxu0
    %136 = vdwg.mxu0
    %v137 = vadd.f32 %v47, %v129
    %v138 = vadd.f32 %v48, %v134
    %vm139 = vcmask 523264
    %140 = vst.msk [vmem:[#allocation2] sm:$0xff] %vm139, %v137
    %141 = vst.msk [vmem:[#allocation2 + $0x8] sm:$0xff] %vm139, %v138
    // Predicated region
    $region22: #{linear_forward.1} parent=1 // pred_check
      %p142 = pneg %p40
    $region23: #{linear_forward.1} parent=1 // pred_check_branch
      %144 = sbr.rel (%p142) target = $region25
    $region24: #{linear_forward.1} parent=1 // pred_region
      %v145 = vld [vmem:[#allocation2] sm:$0xff]
      %v146 = vld [vmem:[#allocation2 + $0x8] sm:$0xff]
      %147 = vst.msk [vmem:[#allocation8] sm:$0xff] %vm139, %v145
      %148 = vst.msk [vmem:[#allocation8 + $0x8] sm:$0xff] %vm139, %v146
    $region25: #{linear_forward.1} parent=1 // pred_fallthru
      _
    // Predicated region
    $region26: #{linear_forward.1} parent=1 // pred_check
      _
    $region27: #{linear_forward.1} parent=1 // pred_check_branch
      %150 = sbr.rel (0) target = $region29
    $region28: #{linear_forward.1} parent=1 // pred_region
      %s152 = ssub.s32 256, 256
      %153 = vsyncadd [#allocation5], %s152
      %s154 = sshll.u32 [#allocation8], 4
      %s155 = int_to_ptr.vmem [resolvable:$true] %s154
      %160 = dma.vmem_to_hbm [thread:$0]  %s155, 256, %s2, [#allocation5], 128, 128, 8
    $region29: #{linear_forward.1} parent=1 // pred_fallthru
      _
    // Predicated region
    $region30: #{linear_forward.1} parent=1 // pred_check
      _
    $region31: #{linear_forward.1} parent=1 // pred_check_branch
      %162 = sbr.rel (0) target = $region33
    $region32: #{linear_forward.1} parent=1 // pred_region
      %163 = dma.done [#allocation5], 256
    $region33: #{linear_forward.1} parent=1 // pred_fallthru
      _
    %164 = vsyncpa [#allocation4], 1
    %165 = vsyncpa [#allocation7], 1
    %166 = vsyncpa [#allocation5], 1

</llo_original>
